<compile_context>
chip_gen: v7x
topology: tpu7x:2x2x1
jax: 0.10.0
libtpu: 0.0.40
codegen_flags: <defaults>
</compile_context>

<pallas_src>
import functools

import jax
import jax.numpy as jnp
from jax.experimental import pallas as pl
from jax.experimental.pallas import tpu as pltpu


def _nll_rows(logits_ref, labels):
    """Per-row -log softmax(logits)[label] (PyTorch CrossEntropyLoss, reduction='none')."""
    logits = logits_ref[...].astype(jnp.float32)               # cast in-kernel, DMA native dtype
    m = jnp.max(logits, axis=-1, keepdims=True)                 # (TB, 1)
    shifted = logits - m                                        # (TB, C)
    # TODO(synk): on v7x / compute-bound configs, push these two lane reductions onto
    # the idle MXU (jnp.dot(x, ones((C,1)), Precision.HIGHEST)) to relieve the XLU.
    lse = jnp.log(jnp.sum(jnp.exp(shifted), axis=-1, keepdims=True))   # (TB, 1)
    col = jax.lax.broadcasted_iota(jnp.int32, logits.shape, 1)         # (TB, C)
    picked = jnp.sum(jnp.where(col == labels, shifted, 0.0),
                     axis=-1, keepdims=True)                    # (TB, 1) == shifted[b, label[b]]
    return lse - picked                                         # (TB, 1)


def _multitask_loss_kernel(batch_size, tb, steps_per_core, num_full_tiles, needs_mask,
                           w_ref,                               # (3,) f32 in SMEM (scalar prefetch)
                           vp_ref, tp_ref, vtp_ref,             # (TB, C_*) logits, native dtype
                           lab_ref,                             # (TB, 3) int32 packed labels
                           out_ref,                             # (1, 8, 128) f32 per-core block
                           acc_ref):                            # (1, 1) f32 VMEM scratch
    c = pl.program_id(0)                                        # core-split axis ("parallel")
    j = pl.program_id(1)                                        # per-core batch-tile step

    @pl.when(j == 0)
    def _init():
        acc_ref[...] = jnp.zeros_like(acc_ref)

    labels = lab_ref[...]                                       # (TB, 3) int32
    # Fused weighted per-row NLL for all three tasks (single cross-sublane reduce below).
    # TODO(synk): PyTorch's default ignore_index=-100 is not handled (assumes valid labels).
    nll = (w_ref[0] * _nll_rows(vp_ref, labels[:, 0:1])
           + w_ref[1] * _nll_rows(tp_ref, labels[:, 1:2])
           + w_ref[2] * _nll_rows(vtp_ref, labels[:, 2:3]))     # (TB, 1)

    t = c * steps_per_core + j                                  # logical (unclamped) tile index

    def _acc_full():
        acc_ref[...] += jnp.sum(nll, axis=0, keepdims=True)

    def _acc_masked():
        # Partial last tile, or an out-of-range duplicate tile (its block index was
        # clamped in the index_map): select-away invalid rows (never multiply -> NaN-safe).
        row = t * tb + jax.lax.broadcasted_iota(jnp.int32, (tb, 1), 0)
        acc_ref[...] += jnp.sum(jnp.where(row < batch_size, nll, 0.0),
                                axis=0, keepdims=True)

    if needs_mask:                                              # trace-time choice
        pl.when(t < num_full_tiles)(_acc_full)
        pl.when(t >= num_full_tiles)(_acc_masked)
    else:
        _acc_full()

    @pl.when(j == steps_per_core - 1)
    def _finalize():
        # Per-core partial mean; the wrapper adds the per-core partials.
        scaled = acc_ref[...] * jnp.float32(1.0 / batch_size)   # (1, 1)
        out_ref[...] = jnp.broadcast_to(scaled[None], out_ref.shape)


def multitask_loss_three_tasks(verb_preds, target_preds, verbtarget_preds,
                               verb_labels, target_labels, verbtarget_labels,
                               verb_w=1.0, target_w=1.0, verbtarget_w=1.0,
                               tile_b=2048, num_cores=2):
    """Forward of MultiTaskLossThreeTasks (use_wce=False path)."""
    B = verb_preds.shape[0]

    # Pack the three label vectors into one (B, 3) int32 array: one narrow DMA per step
    # instead of three lane-padded (tb, 1) blocks.
    labels = jnp.stack(
        [verb_labels.astype(jnp.int32).reshape(B),
         target_labels.astype(jnp.int32).reshape(B),
         verbtarget_labels.astype(jnp.int32).reshape(B)], axis=1)
    weights = jnp.asarray([verb_w, target_w, verbtarget_w], dtype=jnp.float32)

    # Batch tile: whole batch if it is small, otherwise tile_b rows (multiple of 8).
    tb = B if B <= tile_b else tile_b
    num_tiles = pl.cdiv(B, tb)
    steps_per_core = pl.cdiv(num_tiles, num_cores)
    num_full_tiles = B // tb
    needs_mask = (num_cores * steps_per_core * tb) != B

    kernel = functools.partial(_multitask_loss_kernel, B, tb, steps_per_core,
                               num_full_tiles, needs_mask)

    def row_spec(width):
        # Clamp the logical tile index so the duplicated tail tiles of the core split
        # stay in-bounds; their contribution is masked to zero inside the kernel.
        return pl.BlockSpec(
            (tb, width),
            lambda c, j, w: (jnp.minimum(c * steps_per_core + j, num_tiles - 1), 0))

    out = pl.pallas_call(
        kernel,
        out_shape=jax.ShapeDtypeStruct((num_cores, 8, 128), jnp.float32),
        grid_spec=pltpu.PrefetchScalarGridSpec(
            num_scalar_prefetch=1,               # loss weights -> SMEM, no recompile per config
            grid=(num_cores, steps_per_core),
            in_specs=[
                row_spec(verb_preds.shape[1]),
                row_spec(target_preds.shape[1]),
                row_spec(verbtarget_preds.shape[1]),
                row_spec(3),                     # packed labels
            ],
            out_specs=pl.BlockSpec((1, 8, 128), lambda c, j, w: (c, 0, 0)),
            scratch_shapes=[pltpu.VMEM((1, 1), jnp.float32)],
        ),
        compiler_params=pltpu.CompilerParams(
            # Core-split axis is independent (both TCs on v7x); the batch-tile axis
            # carries the resident accumulator -> reduction ("arbitrary").
            dimension_semantics=("parallel", "arbitrary"),
            vmem_limit_bytes=32 * 1024 * 1024,
        ),
    )(weights,
      verb_preds, target_preds, verbtarget_preds,   # native dtype: no wrapper upcast
      labels)
    # Sum of per-core partial means == full weighted loss.
    return jnp.sum(out[:, 0, 0])


def _reference(verb_preds, target_preds, verbtarget_preds,
               verb_labels, target_labels, verbtarget_labels,
               verb_w=1.0, target_w=1.0, verbtarget_w=1.0):
    def ce(logits, labels):
        logp = jax.nn.log_softmax(logits.astype(jnp.float32), axis=-1)
        return -jnp.mean(jnp.take_along_axis(logp, labels[:, None].astype(jnp.int32), axis=-1))
    return (verb_w * ce(verb_preds, verb_labels)
            + target_w * ce(target_preds, target_labels)
            + verbtarget_w * ce(verbtarget_preds, verbtarget_labels))


if __name__ == "__main__":
    key = jax.random.PRNGKey(0)
    k1, k2, k3, k4, k5, k6 = jax.random.split(key, 6)

    B = 8                # batch
    N_VERB = 10          # verb classes
    N_TARGET = 15        # target classes
    N_VT = 150           # verb-target joint classes

    verb_preds = jax.random.normal(k1, (B, N_VERB), dtype=jnp.float32)
    target_preds = jax.random.normal(k2, (B, N_TARGET), dtype=jnp.float32)
    verbtarget_preds = jax.random.normal(k3, (B, N_VT), dtype=jnp.float32)
    verb_labels = jax.random.randint(k4, (B,), 0, N_VERB, dtype=jnp.int32)
    target_labels = jax.random.randint(k5, (B,), 0, N_TARGET, dtype=jnp.int32)
    verbtarget_labels = jax.random.randint(k6, (B,), 0, N_VT, dtype=jnp.int32)

    # config weights (module default is 1.0 each; non-trivial values exercise the
    # SMEM-weight path).
    vw, tw, vtw = 1.0, 0.5, 2.0

    loss = multitask_loss_three_tasks(
        verb_preds, target_preds, verbtarget_preds,
        verb_labels, target_labels, verbtarget_labels,
        verb_w=vw, target_w=tw, verbtarget_w=vtw)
    loss = jax.block_until_ready(loss)

    ref = _reference(
        verb_preds, target_preds, verbtarget_preds,
        verb_labels, target_labels, verbtarget_labels,
        verb_w=vw, target_w=tw, verbtarget_w=vtw)

    assert jnp.allclose(loss, ref, rtol=1e-5, atol=1e-5), (loss, ref)
    print("KERNEL_OK")
</pallas_src>

<mosaic_0001>
module attributes {stable_mosaic.version = 11 : i64} {
  func.func @_multitask_loss_kernel(%arg0: i32, %arg1: i32, %arg2: memref<3xf32, #tpu.memory_space<smem>>, %arg3: memref<8x10xf32, #tpu.memory_space<vmem>>, %arg4: memref<8x15xf32, #tpu.memory_space<vmem>>, %arg5: memref<8x150xf32, #tpu.memory_space<vmem>>, %arg6: memref<8x3xi32, #tpu.memory_space<vmem>>, %arg7: memref<1x8x128xf32, #tpu.memory_space<vmem>>, %arg8: memref<1x1xf32, #tpu.memory_space<vmem>>) attributes {dimension_semantics = [#tpu.dimension_semantics<parallel>, #tpu.dimension_semantics<arbitrary>], iteration_bounds = array<i64: 2, 1>, scalar_prefetch = 1 : i64, scratch_operands = 1 : i64, tpu.core_type = #tpu.core_type<tc>, window_params = [{transform_indices = @transform_0, window_bounds = array<i64: 8, 10>}, {transform_indices = @transform_1, window_bounds = array<i64: 8, 15>}, {transform_indices = @transform_2, window_bounds = array<i64: 8, 150>}, {transform_indices = @transform_3, window_bounds = array<i64: 8, 3>}, {transform_indices = @transform_4, window_bounds = array<i64: 1, 8, 128>}]} {
    %c0_i32 = arith.constant 0 : i32
    %0 = arith.cmpi eq, %arg1, %c0_i32 : i32
    %1 = arith.extui %0 : i1 to i32
    %c0_i32_0 = arith.constant 0 : i32
    %2 = arith.cmpi ne, %1, %c0_i32_0 : i32
    scf.if %2 {
      %cst_26 = arith.constant 0.000000e+00 : f32
      %80 = vector.broadcast %cst_26 : f32 to vector<1x1xf32>
      %c0_27 = arith.constant 0 : index
      %c0_28 = arith.constant 0 : index
      %81 = vector.load %arg8[%c0_27, %c0_28] : memref<1x1xf32, #tpu.memory_space<vmem>>, vector<1x1xf32>
      tpu.vector_store %arg8[%c0_27, %c0_28], %80 {strides = array<i32>} : memref<1x1xf32, #tpu.memory_space<vmem>>, vector<1x1xf32>,
    } else {
    }
    %c0 = arith.constant 0 : index
    %c0_1 = arith.constant 0 : index
    %3 = vector.load %arg6[%c0, %c0_1] : memref<8x3xi32, #tpu.memory_space<vmem>>, vector<8x3xi32>
    %c0_2 = arith.constant 0 : index
    %4 = memref.load %arg2[%c0_2] : memref<3xf32, #tpu.memory_space<smem>>
    %5 = vector.extract_strided_slice %3 {offsets = [0, 0], sizes = [8, 1], strides = [1, 1]} : vector<8x3xi32> to vector<8x1xi32>
    %c0_3 = arith.constant 0 : index
    %c0_4 = arith.constant 0 : index
    %6 = vector.load %arg3[%c0_3, %c0_4] : memref<8x10xf32, #tpu.memory_space<vmem>>, vector<8x10xf32>
    %cst = arith.constant dense<0xFF800000> : vector<8xf32>
    %7 = vector.multi_reduction <maximumf>, %6, %cst [1] : vector<8x10xf32> to vector<8xf32>
    %8 = vector.shape_cast %7 : vector<8xf32> to vector<8x1xf32>
    %9 = vector.broadcast %8 : vector<8x1xf32> to vector<8x10xf32>
    %10 = arith.subf %6, %9 : vector<8x10xf32>
    %11 = math.exp %10 : vector<8x10xf32>
    %cst_5 = arith.constant dense<0.000000e+00> : vector<8xf32>
    %12 = vector.multi_reduction <add>, %11, %cst_5 [1] : vector<8x10xf32> to vector<8xf32>
    %13 = vector.shape_cast %12 : vector<8xf32> to vector<8x1xf32>
    %14 = math.log %13 : vector<8x1xf32>
    %15 = tpu.iota {dimensions = array<i32: 1>} : vector<8x10xi32>
    %16 = vector.broadcast %5 : vector<8x1xi32> to vector<8x10xi32>
    %17 = arith.cmpi eq, %15, %16 : vector<8x10xi32>
    %cst_6 = arith.constant 0.000000e+00 : f32
    %18 = vector.broadcast %cst_6 : f32 to vector<8x10xf32>
    %19 = arith.select %17, %10, %18 : vector<8x10xi1>, vector<8x10xf32>
    %cst_7 = arith.constant dense<0.000000e+00> : vector<8xf32>
    %20 = vector.multi_reduction <add>, %19, %cst_7 [1] : vector<8x10xf32> to vector<8xf32>
    %21 = vector.shape_cast %20 : vector<8xf32> to vector<8x1xf32>
    %22 = arith.subf %14, %21 : vector<8x1xf32>
    %23 = vector.broadcast %4 : f32 to vector<8x1xf32>
    %24 = arith.mulf %23, %22 : vector<8x1xf32>
    %c1 = arith.constant 1 : index
    %25 = memref.load %arg2[%c1] : memref<3xf32, #tpu.memory_space<smem>>
    %26 = vector.extract_strided_slice %3 {offsets = [0, 1], sizes = [8, 1], strides = [1, 1]} : vector<8x3xi32> to vector<8x1xi32>
    %c0_8 = arith.constant 0 : index
    %c0_9 = arith.constant 0 : index
    %27 = vector.load %arg4[%c0_8, %c0_9] : memref<8x15xf32, #tpu.memory_space<vmem>>, vector<8x15xf32>
    %cst_10 = arith.constant dense<0xFF800000> : vector<8xf32>
    %28 = vector.multi_reduction <maximumf>, %27, %cst_10 [1] : vector<8x15xf32> to vector<8xf32>
    %29 = vector.shape_cast %28 : vector<8xf32> to vector<8x1xf32>
    %30 = vector.broadcast %29 : vector<8x1xf32> to vector<8x15xf32>
    %31 = arith.subf %27, %30 : vector<8x15xf32>
    %32 = math.exp %31 : vector<8x15xf32>
    %cst_11 = arith.constant dense<0.000000e+00> : vector<8xf32>
    %33 = vector.multi_reduction <add>, %32, %cst_11 [1] : vector<8x15xf32> to vector<8xf32>
    %34 = vector.shape_cast %33 : vector<8xf32> to vector<8x1xf32>
    %35 = math.log %34 : vector<8x1xf32>
    %36 = tpu.iota {dimensions = array<i32: 1>} : vector<8x15xi32>
    %37 = vector.broadcast %26 : vector<8x1xi32> to vector<8x15xi32>
    %38 = arith.cmpi eq, %36, %37 : vector<8x15xi32>
    %cst_12 = arith.constant 0.000000e+00 : f32
    %39 = vector.broadcast %cst_12 : f32 to vector<8x15xf32>
    %40 = arith.select %38, %31, %39 : vector<8x15xi1>, vector<8x15xf32>
    %cst_13 = arith.constant dense<0.000000e+00> : vector<8xf32>
    %41 = vector.multi_reduction <add>, %40, %cst_13 [1] : vector<8x15xf32> to vector<8xf32>
    %42 = vector.shape_cast %41 : vector<8xf32> to vector<8x1xf32>
    %43 = arith.subf %35, %42 : vector<8x1xf32>
    %44 = vector.broadcast %25 : f32 to vector<8x1xf32>
    %45 = arith.mulf %44, %43 : vector<8x1xf32>
    %46 = arith.addf %24, %45 : vector<8x1xf32>
    %c2 = arith.constant 2 : index
    %47 = memref.load %arg2[%c2] : memref<3xf32, #tpu.memory_space<smem>>
    %48 = vector.extract_strided_slice %3 {offsets = [0, 2], sizes = [8, 1], strides = [1, 1]} : vector<8x3xi32> to vector<8x1xi32>
    %c0_14 = arith.constant 0 : index
    %c0_15 = arith.constant 0 : index
    %49 = vector.load %arg5[%c0_14, %c0_15] : memref<8x150xf32, #tpu.memory_space<vmem>>, vector<8x150xf32>
    %cst_16 = arith.constant dense<0xFF800000> : vector<8xf32>
    %50 = vector.multi_reduction <maximumf>, %49, %cst_16 [1] : vector<8x150xf32> to vector<8xf32>
    %51 = vector.shape_cast %50 : vector<8xf32> to vector<8x1xf32>
    %52 = vector.broadcast %51 : vector<8x1xf32> to vector<8x150xf32>
    %53 = arith.subf %49, %52 : vector<8x150xf32>
    %54 = math.exp %53 : vector<8x150xf32>
    %cst_17 = arith.constant dense<0.000000e+00> : vector<8xf32>
    %55 = vector.multi_reduction <add>, %54, %cst_17 [1] : vector<8x150xf32> to vector<8xf32>
    %56 = vector.shape_cast %55 : vector<8xf32> to vector<8x1xf32>
    %57 = math.log %56 : vector<8x1xf32>
    %58 = tpu.iota {dimensions = array<i32: 1>} : vector<8x150xi32>
    %59 = vector.broadcast %48 : vector<8x1xi32> to vector<8x150xi32>
    %60 = arith.cmpi eq, %58, %59 : vector<8x150xi32>
    %cst_18 = arith.constant 0.000000e+00 : f32
    %61 = vector.broadcast %cst_18 : f32 to vector<8x150xf32>
    %62 = arith.select %60, %53, %61 : vector<8x150xi1>, vector<8x150xf32>
    %cst_19 = arith.constant dense<0.000000e+00> : vector<8xf32>
    %63 = vector.multi_reduction <add>, %62, %cst_19 [1] : vector<8x150xf32> to vector<8xf32>
    %64 = vector.shape_cast %63 : vector<8xf32> to vector<8x1xf32>
    %65 = arith.subf %57, %64 : vector<8x1xf32>
    %66 = vector.broadcast %47 : f32 to vector<8x1xf32>
    %67 = arith.mulf %66, %65 : vector<8x1xf32>
    %68 = arith.addf %46, %67 : vector<8x1xf32>
    %c1_i32 = arith.constant 1 : i32
    %69 = arith.muli %arg0, %c1_i32 : i32
    %70 = arith.addi %69, %arg1 : i32
    %c1_i32_20 = arith.constant 1 : i32
    %71 = arith.cmpi slt, %70, %c1_i32_20 : i32
    %72 = arith.extui %71 : i1 to i32
    %c0_i32_21 = arith.constant 0 : i32
    %73 = arith.cmpi ne, %72, %c0_i32_21 : i32
    scf.if %73 {
      %c0_26 = arith.constant 0 : index
      %c0_27 = arith.constant 0 : index
      %80 = vector.load %arg8[%c0_26, %c0_27] : memref<1x1xf32, #tpu.memory_space<vmem>>, vector<1x1xf32>
      %cst_28 = arith.constant dense<0.000000e+00> : vector<1xf32>
      %81 = vector.multi_reduction <add>, %68, %cst_28 [0] : vector<8x1xf32> to vector<1xf32>
      %82 = vector.shape_cast %81 : vector<1xf32> to vector<1x1xf32>
      %83 = arith.addf %80, %82 : vector<1x1xf32>
      %c0_29 = arith.constant 0 : index
      %c0_30 = arith.constant 0 : index
      %84 = vector.load %arg8[%c0_29, %c0_30] : memref<1x1xf32, #tpu.memory_space<vmem>>, vector<1x1xf32>
      tpu.vector_store %arg8[%c0_29, %c0_30], %83 {strides = array<i32>} : memref<1x1xf32, #tpu.memory_space<vmem>>, vector<1x1xf32>,
    } else {
    }
    %c1_i32_22 = arith.constant 1 : i32
    %74 = arith.cmpi sge, %70, %c1_i32_22 : i32
    %75 = arith.extui %74 : i1 to i32
    %c0_i32_23 = arith.constant 0 : i32
    %76 = arith.cmpi ne, %75, %c0_i32_23 : i32
    scf.if %76 {
      %c8_i32 = arith.constant 8 : i32
      %80 = arith.muli %70, %c8_i32 : i32
      %81 = tpu.iota {dimensions = array<i32: 0>} : vector<8x1xi32>
      %82 = vector.broadcast %80 : i32 to vector<8x1xi32>
      %83 = arith.addi %82, %81 : vector<8x1xi32>
      %c0_26 = arith.constant 0 : index
      %c0_27 = arith.constant 0 : index
      %84 = vector.load %arg8[%c0_26, %c0_27] : memref<1x1xf32, #tpu.memory_space<vmem>>, vector<1x1xf32>
      %c8_i32_28 = arith.constant 8 : i32
      %85 = vector.broadcast %c8_i32_28 : i32 to vector<8x1xi32>
      %86 = arith.cmpi slt, %83, %85 : vector<8x1xi32>
      %cst_29 = arith.constant 0.000000e+00 : f32
      %87 = vector.broadcast %cst_29 : f32 to vector<8x1xf32>
      %88 = arith.select %86, %68, %87 : vector<8x1xi1>, vector<8x1xf32>
      %cst_30 = arith.constant dense<0.000000e+00> : vector<1xf32>
      %89 = vector.multi_reduction <add>, %88, %cst_30 [0] : vector<8x1xf32> to vector<1xf32>
      %90 = vector.shape_cast %89 : vector<1xf32> to vector<1x1xf32>
      %91 = arith.addf %84, %90 : vector<1x1xf32>
      %c0_31 = arith.constant 0 : index
      %c0_32 = arith.constant 0 : index
      %92 = vector.load %arg8[%c0_31, %c0_32] : memref<1x1xf32, #tpu.memory_space<vmem>>, vector<1x1xf32>
      tpu.vector_store %arg8[%c0_31, %c0_32], %91 {strides = array<i32>} : memref<1x1xf32, #tpu.memory_space<vmem>>, vector<1x1xf32>,
    } else {
    }
    %c0_i32_24 = arith.constant 0 : i32
    %77 = arith.cmpi eq, %arg1, %c0_i32_24 : i32
    %78 = arith.extui %77 : i1 to i32
    %c0_i32_25 = arith.constant 0 : i32
    %79 = arith.cmpi ne, %78, %c0_i32_25 : i32
    scf.if %79 {
      %c0_26 = arith.constant 0 : index
      %c0_27 = arith.constant 0 : index
      %80 = vector.load %arg8[%c0_26, %c0_27] : memref<1x1xf32, #tpu.memory_space<vmem>>, vector<1x1xf32>
      %cst_28 = arith.constant 1.250000e-01 : f32
      %81 = vector.broadcast %cst_28 : f32 to vector<1x1xf32>
      %82 = arith.mulf %80, %81 : vector<1x1xf32>
      %83 = vector.shape_cast %82 : vector<1x1xf32> to vector<1x1x1xf32>
      %84 = vector.shape_cast %83 : vector<1x1x1xf32> to vector<1x1x1xf32>
      %85 = vector.broadcast %84 : vector<1x1x1xf32> to vector<1x8x128xf32>
      %c0_29 = arith.constant 0 : index
      %c0_30 = arith.constant 0 : index
      %c0_31 = arith.constant 0 : index
      %86 = vector.load %arg7[%c0_29, %c0_30, %c0_31] : memref<1x8x128xf32, #tpu.memory_space<vmem>>, vector<1x8x128xf32>
      tpu.vector_store %arg7[%c0_29, %c0_30, %c0_31], %85 {strides = array<i32>} : memref<1x8x128xf32, #tpu.memory_space<vmem>>, vector<1x8x128xf32>,
    } else {
    }
    return
  }
  func.func @transform_0(%arg0: i32, %arg1: i32, %arg2: memref<3xf32, #tpu.memory_space<smem>>) -> (i32, i32) {
    %c1_i32 = arith.constant 1 : i32
    %0 = arith.muli %arg0, %c1_i32 : i32
    %1 = arith.addi %0, %arg1 : i32
    %c0_i32 = arith.constant 0 : i32
    %2 = arith.minsi %1, %c0_i32 : i32
    %c0_i32_0 = arith.constant 0 : i32
    %c0_i32_1 = arith.constant 0 : i32
    return %2, %c0_i32_0 : i32, i32
  }
  func.func @transform_1(%arg0: i32, %arg1: i32, %arg2: memref<3xf32, #tpu.memory_space<smem>>) -> (i32, i32) {
    %c1_i32 = arith.constant 1 : i32
    %0 = arith.muli %arg0, %c1_i32 : i32
    %1 = arith.addi %0, %arg1 : i32
    %c0_i32 = arith.constant 0 : i32
    %2 = arith.minsi %1, %c0_i32 : i32
    %c0_i32_0 = arith.constant 0 : i32
    %c0_i32_1 = arith.constant 0 : i32
    return %2, %c0_i32_0 : i32, i32
  }
  func.func @transform_2(%arg0: i32, %arg1: i32, %arg2: memref<3xf32, #tpu.memory_space<smem>>) -> (i32, i32) {
    %c1_i32 = arith.constant 1 : i32
    %0 = arith.muli %arg0, %c1_i32 : i32
    %1 = arith.addi %0, %arg1 : i32
    %c0_i32 = arith.constant 0 : i32
    %2 = arith.minsi %1, %c0_i32 : i32
    %c0_i32_0 = arith.constant 0 : i32
    %c0_i32_1 = arith.constant 0 : i32
    return %2, %c0_i32_0 : i32, i32
  }
  func.func @transform_3(%arg0: i32, %arg1: i32, %arg2: memref<3xf32, #tpu.memory_space<smem>>) -> (i32, i32) {
    %c1_i32 = arith.constant 1 : i32
    %0 = arith.muli %arg0, %c1_i32 : i32
    %1 = arith.addi %0, %arg1 : i32
    %c0_i32 = arith.constant 0 : i32
    %2 = arith.minsi %1, %c0_i32 : i32
    %c0_i32_0 = arith.constant 0 : i32
    %c0_i32_1 = arith.constant 0 : i32
    return %2, %c0_i32_0 : i32, i32
  }
  func.func @transform_4(%arg0: i32, %arg1: i32, %arg2: memref<3xf32, #tpu.memory_space<smem>>) -> (i32, i32, i32) {
    %c0_i32 = arith.constant 0 : i32
    %c0_i32_0 = arith.constant 0 : i32
    %c0_i32_1 = arith.constant 0 : i32
    return %arg0, %c0_i32, %c0_i32_0 : i32, i32, i32
  }
}

</mosaic_0001>

<llo_original>
// kernel: tpu_custom_call.1
$region0: #{tpu_custom_call.1}
  #allocation0 [shape = 'u32[]', space=smem, size = 0x4, offset = 0x4, fixed_abs, tag = 'smem constant byte address 0x4 - core index']
  #allocation1 [shape = 'u32[144,128]{1,0:T(1,128)}', space=vmem, size = 0x12000, scoped, tag = 'internal scratch']
  #allocation2 [shape = 'f32[1,1]{1,0:T(1,128)}', space=vmem, size = 0x200, scoped, tag = 'scratch operand']
  #allocation3 [shape = 's32[1]{0}', space=sflag, size = 0x4, scoped, tag = 'scoped memory for tpu_custom_call.1']
  #allocation4 [shape = 'u8[512]{0}', space=smem, size = 0x200, scoped, tag = 'prefetched SMEM operand 0']
  %s0 = inlined_call_operand.vmem [shape: f32[3], index: 0, kind: input, shape index: {}]
  %s1 = inlined_call_operand.hbm [shape: f32[8,10], index: 1, kind: input, shape index: {}]
  %s2 = inlined_call_operand.hbm [shape: f32[8,15], index: 2, kind: input, shape index: {}]
  %s3 = inlined_call_operand.vmem [shape: f32[8,150], index: 3, kind: input, shape index: {}]
  %s4 = inlined_call_operand.vmem [shape: s32[8,3], index: 4, kind: input, shape index: {}]
  %s5 = inlined_call_operand.hbm [shape: f32[2,8,128], index: 5, kind: output, shape index: {}]
  %s6 = sld [smem:[#allocation0]]
  $region73: #{tpu_custom_call.1} parent=0
    _
  %s8 = ssub.s32 1, %s6
  %s9 = scalar_select 0, %s8, %s6
  %s10 = sshll.u32 %s0, 4
  %s11 = int_to_ptr.vmem [resolvable:$true] %s10
  %13 = dma.vmem_to_smem %s11, 16, [#allocation4], [#allocation3]
  %14 = dma.done [#allocation3], 16
  %15 = sfence
  $region1: #{tpu_custom_call.1} parent=0
    #allocation5 [shape = 'u8[8192]{0}', space=vmem, size = 0x2000, scoped, tag = 'input window, operand 1']
    #allocation6 [shape = 's32[2]{0}', space=sflag, size = 0x8, scoped, tag = 'scoped memory for tpu_custom_call.1']
    #allocation7 [shape = 's32[2]{0}', space=sflag, size = 0x8, scoped, tag = 'scoped memory for tpu_custom_call.1']
    #allocation8 [shape = 'u8[8192]{0}', space=vmem, size = 0x2000, scoped, tag = 'input window, operand 2']
    #allocation9 [shape = 's32[2]{0}', space=sflag, size = 0x8, scoped, tag = 'scoped memory for tpu_custom_call.1']
    #allocation10 [shape = 'u8[8192]{0}', space=vmem, size = 0x2000, scoped, tag = 'output window, operand 0']
    %16 = vsyncpa [#allocation6], 0
    %s17 = scalar_lea.sflag [#allocation6], 1
    %18 = vsyncpa %s17, 0
    %19 = vsyncpa [#allocation9], 0
    %s20 = scalar_lea.sflag [#allocation9], 1
    %21 = vsyncpa %s20, 0
    %22 = vsyncpa [#allocation7], 0
    %s23 = scalar_lea.sflag [#allocation7], 1
    %24 = vsyncpa %s23, 0
    loop: start=0, step=1, limit=4
    $region2: #{tpu_custom_call.1} parent=1 // loop_pre_header
      _
    $region3: #{tpu_custom_call.1} parent=1 // loop_header
      %s26 = sphi 0, %s30
      %p27 = scmp.ge.s32.totalorder %s26, 4
      %s33 = sphi 0, %s45
      %s34 = sphi 0, %s41
      %s35 = sphi 0, %s33
      %s36 = sphi 0, %s34
      %s37 = sphi 0, %s35
      %s38 = sphi 0, %s36
      %s54 = sphi 0, %s56
      %s57 = sphi 0, %s54
      %s58 = sphi 0, %s57
      %s74 = sphi 0, %s58
      %s86 = sphi 0, %s88
      %s89 = sphi 0, %s86
      %s90 = sphi 0, %s89
      %s106 = sphi 0, %s90
      %s118 = sphi 0, %s120
      %s121 = sphi 0, %s118
      %s122 = sphi 0, %s121
      %s138 = sphi 0, %s122
      %s150 = sphi 0, %s152
      %s153 = sphi 0, %s150
      %s154 = sphi 0, %s153
      %s170 = sphi 0, %s154
      %s176 = sphi 0, %s178
      %s179 = sphi 0, %s176
      %s180 = sphi 0, %s179
      %s196 = sphi 0, %s180
    $region4: #{tpu_custom_call.1} parent=1 // loop_header_branch
      %29 = sbr.rel (%p27) target = $region8
    $region5: #{tpu_custom_call.1} parent=1 // loop_body
      %s31 = ssub.s32 %s26, 1
      %s32 = ssub.s32 %s26, 2
      %s39 = sadd.s32 1, %s34
      %p40 = scmp.ge.s32.totalorder %s39, 1
      %s41 = scalar_select %p40, 0, %s39
      %s42 = sadd.s32 1, %s33
      %s43 = scalar_select %p40, %s42, %s33
      %p44 = scmp.ge.s32.totalorder %s43, 2
      %s45 = scalar_select %p44, 0, %s43
      %s46 = sadd.s32 %s33, %s34
      %p47 = scmp.lt.s32.totalorder %s46, 0
      %s48 = scalar_select %p47, %s46, 0
      %s49 = sadd.s32 %s45, %s41
      %p50 = scmp.lt.s32.totalorder %s49, 0
      %s51 = scalar_select %p50, %s49, 0
      %s52 = ssub.s32 %s48, %s51
      %p53 = scmp.eq.s32.totalorder %s52, 0
      %s55 = sadd.s32 %s54, 1
      %s56 = scalar_select %p53, %s54, %s55
      %p59 = pneg %p53
      %p60 = scmp.eq.s32.totalorder %s26, 1
      %p61 = por %p59, %p60
      %p62 = scmp.ne.s32.totalorder %s54, %s57
      %p63 = scmp.eq.s32.totalorder %s26, 0
      %p64 = por %p62, %p63
      %p65 = scmp.ne.s32.totalorder %s54, %s57
      %p66 = scmp.eq.s32.totalorder %s31, 1
      %p67 = por %p65, %p66
      %p68 = scmp.ne.s32.totalorder %s57, %s58
      %p69 = scmp.eq.s32.totalorder %s31, 0
      %p70 = por %p68, %p69
      %p71 = scmp.ne.s32.totalorder %s57, %s58
      %p72 = scmp.eq.s32.totalorder %s32, 1
      %p73 = por %p71, %p72
      %p75 = scmp.ne.s32.totalorder %s58, %s74
      %p76 = scmp.eq.s32.totalorder %s32, 0
      %p77 = por %p75, %p76
      %s78 = sadd.s32 %s33, %s34
      %p79 = scmp.lt.s32.totalorder %s78, 0
      %s80 = scalar_select %p79, %s78, 0
      %s81 = sadd.s32 %s45, %s41
      %p82 = scmp.lt.s32.totalorder %s81, 0
      %s83 = scalar_select %p82, %s81, 0
      %s84 = ssub.s32 %s80, %s83
      %p85 = scmp.eq.s32.totalorder %s84, 0
      %s87 = sadd.s32 %s86, 1
      %s88 = scalar_select %p85, %s86, %s87
      %p91 = pneg %p85
      %p92 = scmp.eq.s32.totalorder %s26, 1
      %p93 = por %p91, %p92
      %p94 = scmp.ne.s32.totalorder %s86, %s89
      %p95 = scmp.eq.s32.totalorder %s26, 0
      %p96 = por %p94, %p95
      %p97 = scmp.ne.s32.totalorder %s86, %s89
      %p98 = scmp.eq.s32.totalorder %s31, 1
      %p99 = por %p97, %p98
      %p100 = scmp.ne.s32.totalorder %s89, %s90
      %p101 = scmp.eq.s32.totalorder %s31, 0
      %p102 = por %p100, %p101
      %p103 = scmp.ne.s32.totalorder %s89, %s90
      %p104 = scmp.eq.s32.totalorder %s32, 1
      %p105 = por %p103, %p104
      %p107 = scmp.ne.s32.totalorder %s90, %s106
      %p108 = scmp.eq.s32.totalorder %s32, 0
      %p109 = por %p107, %p108
      %s110 = sadd.s32 %s33, %s34
      %p111 = scmp.lt.s32.totalorder %s110, 0
      %s112 = scalar_select %p111, %s110, 0
      %s113 = sadd.s32 %s45, %s41
      %p114 = scmp.lt.s32.totalorder %s113, 0
      %s115 = scalar_select %p114, %s113, 0
      %s116 = ssub.s32 %s112, %s115
      %p117 = scmp.eq.s32.totalorder %s116, 0
      %s119 = sadd.s32 %s118, 1
      %s120 = scalar_select %p117, %s118, %s119
      %p123 = pneg %p117
      %p124 = scmp.eq.s32.totalorder %s26, 1
      %p125 = por %p123, %p124
      %p126 = scmp.ne.s32.totalorder %s118, %s121
      %p127 = scmp.eq.s32.totalorder %s26, 0
      %p128 = por %p126, %p127
      %p129 = scmp.ne.s32.totalorder %s118, %s121
      %p130 = scmp.eq.s32.totalorder %s31, 1
      %p131 = por %p129, %p130
      %p132 = scmp.ne.s32.totalorder %s121, %s122
      %p133 = scmp.eq.s32.totalorder %s31, 0
      %p134 = por %p132, %p133
      %p135 = scmp.ne.s32.totalorder %s121, %s122
      %p136 = scmp.eq.s32.totalorder %s32, 1
      %p137 = por %p135, %p136
      %p139 = scmp.ne.s32.totalorder %s122, %s138
      %p140 = scmp.eq.s32.totalorder %s32, 0
      %p141 = por %p139, %p140
      %s142 = sadd.s32 %s33, %s34
      %p143 = scmp.lt.s32.totalorder %s142, 0
      %s144 = scalar_select %p143, %s142, 0
      %s145 = sadd.s32 %s45, %s41
      %p146 = scmp.lt.s32.totalorder %s145, 0
      %s147 = scalar_select %p146, %s145, 0
      %s148 = ssub.s32 %s144, %s147
      %p149 = scmp.eq.s32.totalorder %s148, 0
      %s151 = sadd.s32 %s150, 1
      %s152 = scalar_select %p149, %s150, %s151
      %p155 = pneg %p149
      %p156 = scmp.eq.s32.totalorder %s26, 1
      %p157 = por %p155, %p156
      %p158 = scmp.ne.s32.totalorder %s150, %s153
      %p159 = scmp.eq.s32.totalorder %s26, 0
      %p160 = por %p158, %p159
      %p161 = scmp.ne.s32.totalorder %s150, %s153
      %p162 = scmp.eq.s32.totalorder %s31, 1
      %p163 = por %p161, %p162
      %p164 = scmp.ne.s32.totalorder %s153, %s154
      %p165 = scmp.eq.s32.totalorder %s31, 0
      %p166 = por %p164, %p165
      %p167 = scmp.ne.s32.totalorder %s153, %s154
      %p168 = scmp.eq.s32.totalorder %s32, 1
      %p169 = por %p167, %p168
      %p171 = scmp.ne.s32.totalorder %s154, %s170
      %p172 = scmp.eq.s32.totalorder %s32, 0
      %p173 = por %p171, %p172
      %s174 = ssub.s32 %s33, %s45
      %p175 = scmp.eq.s32.totalorder %s174, 0
      %s177 = sadd.s32 %s176, 1
      %s178 = scalar_select %p175, %s176, %s177
      %p181 = pneg %p175
      %p182 = scmp.eq.s32.totalorder %s26, 1
      %p183 = por %p181, %p182
      %p184 = scmp.ne.s32.totalorder %s176, %s179
      %p185 = scmp.eq.s32.totalorder %s26, 0
      %p186 = por %p184, %p185
      %p187 = scmp.ne.s32.totalorder %s176, %s179
      %p188 = scmp.eq.s32.totalorder %s31, 1
      %p189 = por %p187, %p188
      %p190 = scmp.ne.s32.totalorder %s179, %s180
      %p191 = scmp.eq.s32.totalorder %s31, 0
      %p192 = por %p190, %p191
      %p193 = scmp.ne.s32.totalorder %s179, %s180
      %p194 = scmp.eq.s32.totalorder %s32, 1
      %p195 = por %p193, %p194
      %p197 = scmp.ne.s32.totalorder %s180, %s196
      %p198 = scmp.eq.s32.totalorder %s32, 0
      %p199 = por %p197, %p198
      %p200 = scmp.le.s32.totalorder 1, %s26
      %p201 = scmp.lt.s32.totalorder %s26, 3
      %p202 = pnand %p200, %p201
      %p203 = pneg %p202
      // Predicated region
      $region9: #{tpu_custom_call.1} parent=5 // pred_check
        _
      $region10: #{tpu_custom_call.1} parent=5 // pred_check_branch
        %205 = sbr.rel (%p202) target = $region12
      $region11: #{tpu_custom_call.1} parent=5 // pred_region
        %s206 = ssub.s32 %s26, 1
      $region12: #{tpu_custom_call.1} parent=5 // pred_fallthru
        _
      %p207 = scmp.lt.s32.totalorder %s26, 2
      // Predicated region
      $region13: #{tpu_custom_call.1} parent=5 // pred_check
        %p208 = pneg %p207
      $region14: #{tpu_custom_call.1} parent=5 // pred_check_branch
        %210 = sbr.rel (%p208) target = $region16
      $region15: #{tpu_custom_call.1} parent=5 // pred_region
        // Predicated region
        $region17: #{tpu_custom_call.1} parent=15 // pred_check
          %p211 = pneg %p64
        $region18: #{tpu_custom_call.1} parent=15 // pred_check_branch
          %213 = sbr.rel (%p211) target = $region20
        $region19: #{tpu_custom_call.1} parent=15 // pred_region
          %s214 = sand.u32 %s54, 1
          %s215 = scalar_lea.sflag [#allocation6], %s214
          %s216 = sand.u32 %s54, 1
          %s217 = smul.addr %s216, 8
          %s218 = scalar_lea.vmem [#allocation5], %s217
          %s219 = sadd.s32 %s33, %s34
          %p220 = scmp.lt.s32.totalorder %s219, 0
          %s221 = scalar_select %p220, %s219, 0
          %s223 = ssub.s32 128, 128
          %224 = vsyncadd %s215, %s223
          %s225 = smul.addr %s221, 128
          %s226 = scalar_lea.hbm %s1, %s225
          %s228 = sshll.u32 %s218, 4
          %s229 = int_to_ptr.vmem [resolvable:$true] %s228
          %231 = dma.hbm_to_vmem [thread:$0]  %s226, 128, %s229, %s215
        $region20: #{tpu_custom_call.1} parent=15 // pred_fallthru
          _
        // Predicated region
        $region21: #{tpu_custom_call.1} parent=15 // pred_check
          %p232 = pneg %p96
        $region22: #{tpu_custom_call.1} parent=15 // pred_check_branch
          %234 = sbr.rel (%p232) target = $region24
        $region23: #{tpu_custom_call.1} parent=15 // pred_region
          %s235 = sand.u32 %s86, 1
          %s236 = scalar_lea.sflag [#allocation9], %s235
          %s237 = sand.u32 %s86, 1
          %s238 = smul.addr %s237, 8
          %s239 = scalar_lea.vmem [#allocation8], %s238
          %s240 = sadd.s32 %s33, %s34
          %p241 = scmp.lt.s32.totalorder %s240, 0
          %s242 = scalar_select %p241, %s240, 0
          %s244 = ssub.s32 128, 128
          %245 = vsyncadd %s236, %s244
          %s246 = smul.addr %s242, 128
          %s247 = scalar_lea.hbm %s2, %s246
          %s249 = sshll.u32 %s239, 4
          %s250 = int_to_ptr.vmem [resolvable:$true] %s249
          %252 = dma.hbm_to_vmem [thread:$0]  %s247, 128, %s250, %s236
        $region24: #{tpu_custom_call.1} parent=15 // pred_fallthru
          _
        // Predicated region
        $region25: #{tpu_custom_call.1} parent=15 // pred_check
          %p253 = pneg %p128
        $region26: #{tpu_custom_call.1} parent=15 // pred_check_branch
          %255 = sbr.rel (%p253) target = $region28
        $region27: #{tpu_custom_call.1} parent=15 // pred_region
          %s256 = sadd.s32 %s33, %s34
          %p257 = scmp.lt.s32.totalorder %s256, 0
          %s258 = scalar_select %p257, %s256, 0
          %p259 = scmp.lt.s32.totalorder %s258, 0
          %s260 = scalar_select %p259, %s258, 0
          %s261 = smul.addr %s260, 2
          %s262 = smul.addr %s261, 8
          %s263 = scalar_lea.vmem %s3, %s262
          %s264 = sadd.s32 %s33, %s34
          %p265 = scmp.lt.s32.totalorder %s264, 0
          %s266 = scalar_select %p265, %s264, 0
        $region28: #{tpu_custom_call.1} parent=15 // pred_fallthru
          _
        // Predicated region
        $region29: #{tpu_custom_call.1} parent=15 // pred_check
          %p267 = pneg %p160
        $region30: #{tpu_custom_call.1} parent=15 // pred_check_branch
          %269 = sbr.rel (%p267) target = $region32
        $region31: #{tpu_custom_call.1} parent=15 // pred_region
          %s270 = sadd.s32 %s33, %s34
          %p271 = scmp.lt.s32.totalorder %s270, 0
          %s272 = scalar_select %p271, %s270, 0
          %p273 = scmp.lt.s32.totalorder %s272, 0
          %s274 = scalar_select %p273, %s272, 0
          %s275 = smul.addr %s274, 8
          %s276 = scalar_lea.vmem %s4, %s275
          %s277 = sadd.s32 %s33, %s34
          %p278 = scmp.lt.s32.totalorder %s277, 0
          %s279 = scalar_select %p278, %s277, 0
        $region32: #{tpu_custom_call.1} parent=15 // pred_fallthru
          _
      $region16: #{tpu_custom_call.1} parent=5 // pred_fallthru
        _
      %p280 = scmp.le.s32.totalorder 1, %s26
      %p281 = scmp.lt.s32.totalorder %s26, 3
      %p282 = pnand %p280, %p281
      %p283 = pneg %p282
      // Predicated region
      $region33: #{tpu_custom_call.1} parent=5 // pred_check
        _
      $region34: #{tpu_custom_call.1} parent=5 // pred_check_branch
        %285 = sbr.rel (%p282) target = $region36
      $region35: #{tpu_custom_call.1} parent=5 // pred_region
        %s286 = ssub.s32 %s26, 1
        %s287 = sand.u32 %s57, 1
        %s288 = scalar_lea.sflag [#allocation6], %s287
        %s289 = sand.u32 %s57, 1
        %s290 = smul.addr %s289, 8
        %s291 = scalar_lea.vmem [#allocation5], %s290
        // Predicated region
        $region37: #{tpu_custom_call.1} parent=35 // pred_check
          %p292 = pneg %p70
        $region38: #{tpu_custom_call.1} parent=35 // pred_check_branch
          %294 = sbr.rel (%p292) target = $region40
        $region39: #{tpu_custom_call.1} parent=35 // pred_region
          %295 = dma.done %s288, 128
        $region40: #{tpu_custom_call.1} parent=35 // pred_fallthru
          _
        %s296 = sand.u32 %s89, 1
        %s297 = scalar_lea.sflag [#allocation9], %s296
        %s298 = sand.u32 %s89, 1
        %s299 = smul.addr %s298, 8
        %s300 = scalar_lea.vmem [#allocation8], %s299
        // Predicated region
        $region41: #{tpu_custom_call.1} parent=35 // pred_check
          %p301 = pneg %p102
        $region42: #{tpu_custom_call.1} parent=35 // pred_check_branch
          %303 = sbr.rel (%p301) target = $region44
        $region43: #{tpu_custom_call.1} parent=35 // pred_region
          %304 = dma.done %s297, 128
        $region44: #{tpu_custom_call.1} parent=35 // pred_fallthru
          _
        %s305 = sand.u32 %s57, 1
        %s306 = scalar_lea.sflag [#allocation6], %s305
        %s307 = sand.u32 %s57, 1
        %s308 = smul.addr %s307, 8
        %s309 = scalar_lea.vmem [#allocation5], %s308
        %p310 = pneg %p70
        %p311 = pneg %p67
        %s312 = sand.u32 %s89, 1
        %s313 = scalar_lea.sflag [#allocation9], %s312
        %s314 = sand.u32 %s89, 1
        %s315 = smul.addr %s314, 8
        %s316 = scalar_lea.vmem [#allocation8], %s315
        %p317 = pneg %p102
        %p318 = pneg %p99
        %s319 = sadd.s32 %s35, %s36
        %p320 = scmp.lt.s32.totalorder %s319, 0
        %s321 = scalar_select %p320, %s319, 0
        %p322 = scmp.lt.s32.totalorder %s321, 0
        %s323 = scalar_select %p322, %s321, 0
        %s324 = smul.addr %s323, 2
        %s325 = smul.addr %s324, 8
        %s326 = scalar_lea.vmem %s3, %s325
        %p327 = pneg %p134
        %p328 = pneg %p131
        %s329 = sadd.s32 %s35, %s36
        %p330 = scmp.lt.s32.totalorder %s329, 0
        %s331 = scalar_select %p330, %s329, 0
        %p332 = scmp.lt.s32.totalorder %s331, 0
        %s333 = scalar_select %p332, %s331, 0
        %s334 = smul.addr %s333, 8
        %s335 = scalar_lea.vmem %s4, %s334
        %p336 = pneg %p166
        %p337 = pneg %p163
        %p338 = pneg %p192
        %p339 = pneg %p189
        %s340 = sand.u32 %s179, 1
        %s341 = scalar_lea.sflag [#allocation7], %s340
        %s342 = sand.u32 %s179, 1
        %s343 = smul.addr %s342, 8
        %s344 = scalar_lea.vmem [#allocation10], %s343
        %s345 = sadd.s32 %s35, %s36
        %p346 = scmp.lt.s32.totalorder %s345, 0
        %s347 = scalar_select %p346, %s345, 0
        %s348 = sadd.s32 %s35, %s36
        %p349 = scmp.lt.s32.totalorder %s348, 0
        %s350 = scalar_select %p349, %s348, 0
        %s351 = sadd.s32 %s35, %s36
        %p352 = scmp.lt.s32.totalorder %s351, 0
        %s353 = scalar_select %p352, %s351, 0
        %p354 = scmp.lt.s32.totalorder %s353, 0
        %s355 = scalar_select %p354, %s353, 0
        %s356 = smul.addr %s355, 2
        %s357 = smul.addr %s356, 8
        %s358 = scalar_lea.vmem %s3, %s357
        %s359 = sadd.s32 %s35, %s36
        %p360 = scmp.lt.s32.totalorder %s359, 0
        %s361 = scalar_select %p360, %s359, 0
        %s362 = sadd.s32 %s35, %s36
        %p363 = scmp.lt.s32.totalorder %s362, 0
        %s364 = scalar_select %p363, %s362, 0
        %p365 = scmp.lt.s32.totalorder %s364, 0
        %s366 = scalar_select %p365, %s364, 0
        %s367 = smul.addr %s366, 8
        %s368 = scalar_lea.vmem %s4, %s367
        %s369 = sadd.s32 %s35, %s36
        %p370 = scmp.lt.s32.totalorder %s369, 0
        %s371 = scalar_select %p370, %s369, 0
        %p372 = scmp.eq.s32.totalorder %s36, 0
        // Predicated region
        $region45: #{tpu_custom_call.1} parent=35 // pred_check
          %p373 = pneg %p372
        $region46: #{tpu_custom_call.1} parent=35 // pred_check_branch
          %375 = sbr.rel (%p373) target = $region48
        $region47: #{tpu_custom_call.1} parent=35 // pred_region
          %vm376 = vcmask 0
          %377 = vst.msk [vmem:[#allocation2] sm:$0x1] %vm376, 0.0
        $region48: #{tpu_custom_call.1} parent=35 // pred_fallthru
          _
        %v378 = vld [vmem:[%s368] sm:$0xff]
        %s379 = sld [smem:[#allocation4]]
        %v380 = vld [vmem:[%s291] sm:$0xff]
        %vm381 = vcmask 80896
        %v382 = vsel %vm381, %v380, -inf
        %383 = vmax.xlane.f32.xlu0 %v382
        %v384 = vpop.xlane.xlu0 %383
        %v385 = vsub.f32 %v380, %v384
        %v386 = vmul.f32 %v385, 1.442695
        %v387 = vpow.pop %v386
        %v388 = vsel %vm381, %v387, 0.0
        %389 = vadd.xlane.f32.xlu0 %v388
        %v390 = vpop.xlane.xlu0 %389
        %v391 = vlog2.pop %v390
        %v392 = vmul.f32 %v391, 0.6931472
        %v393 = vlaneseq
        %v394 = vand.u32 %v393, 127
        %395 = vset.pattern.permute.xlu0 0
        %396 = vperm.xlu0 %395, %v378
        %v397 = vpop.permute.xlu0 %396
        %vm398 = vcmp.eq.s32.totalorder %v394, %v397
        %v399 = vsel %vm398, %v385, 0.0
        %v400 = vsel %vm381, %v399, 0.0
        %401 = vadd.xlane.f32.xlu0 %v400
        %v402 = vpop.xlane.xlu0 %401
        %v403 = vsub.f32 %v392, %v402
        %v404 = vstv %s379
        %v405 = vmul.f32 %v404, %v403
        %s406 = sld [smem:[#allocation4 + $0x1]]
        %v407 = vld [vmem:[%s300] sm:$0xff]
        %vm408 = vcmask 121856
        %v409 = vsel %vm408, %v407, -inf
        %410 = vmax.xlane.f32.xlu0 %v409
        %v411 = vpop.xlane.xlu0 %410
        %v412 = vsub.f32 %v407, %v411
        %v413 = vmul.f32 %v412, 1.442695
        %v414 = vpow.pop %v413
        %v415 = vsel %vm408, %v414, 0.0
        %416 = vadd.xlane.f32.xlu0 %v415
        %v417 = vpop.xlane.xlu0 %416
        %v418 = vlog2.pop %v417
        %v419 = vmul.f32 %v418, 0.6931472
        %420 = vset.pattern.permute.xlu0 1
        %421 = vperm.xlu0 %420, %v378
        %v422 = vpop.permute.xlu0 %421
        %vm423 = vcmp.eq.s32.totalorder %v394, %v422
        %v424 = vsel %vm423, %v412, 0.0
        %v425 = vsel %vm408, %v424, 0.0
        %426 = vadd.xlane.f32.xlu0 %v425
        %v427 = vpop.xlane.xlu0 %426
        %v428 = vsub.f32 %v419, %v427
        %v429 = vstv %s406
        %v430 = vmul.f32 %v429, %v428
        %v431 = vadd.f32 %v405, %v430
        %s432 = sld [smem:[#allocation4 + $0x2]]
        %v433 = vld [vmem:[%s358] sm:$0xff]
        %v434 = vld [vmem:[%s358 + $0x8] sm:$0xff]
        %vm435 = vcmask 179200
        %v436 = vsel %vm435, %v434, -inf
        %v437 = vmax.f32 %v433, %v436
        %438 = vmax.xlane.f32.xlu0 %v437
        %v439 = vpop.xlane.xlu0 %438
        %v440 = vsub.f32 %v433, %v439
        %v441 = vsub.f32 %v434, %v439
        %v442 = vmul.f32 %v440, 1.442695
        %v443 = vpow.pop %v442
        %v444 = vmul.f32 %v441, 1.442695
        %v445 = vpow.pop %v444
        %v446 = vsel %vm435, %v445, 0.0
        %v447 = vadd.f32 %v443, %v446
        %448 = vadd.xlane.f32.xlu0 %v447
        %v449 = vpop.xlane.xlu0 %448
        %v450 = vlog2.pop %v449
        %v451 = vmul.f32 %v450, 0.6931472
        %v452 = vadd.s32 %v394, 128
        %453 = vset.pattern.permute.xlu0 2
        %454 = vperm.xlu0 %453, %v378
        %v455 = vpop.permute.xlu0 %454
        %vm456 = vcmp.eq.s32.totalorder %v394, %v455
        %vm457 = vcmp.eq.s32.totalorder %v452, %v455
        %v458 = vsel %vm456, %v440, 0.0
        %v459 = vsel %vm457, %v441, 0.0
        %v460 = vsel %vm435, %v459, 0.0
        %v461 = vadd.f32 %v458, %v460
        %462 = vadd.xlane.f32.xlu0 %v461
        %v463 = vpop.xlane.xlu0 %462
        %v464 = vsub.f32 %v451, %v463
        %v465 = vstv %s432
        %v466 = vmul.f32 %v465, %v464
        %v467 = vadd.f32 %v431, %v466
        %s468 = sadd.s32 %s35, %s36
        %p469 = scmp.lt.s32.totalorder %s468, 1
        // Predicated region
        $region49: #{tpu_custom_call.1} parent=35 // pred_check
          %p470 = pneg %p469
        $region50: #{tpu_custom_call.1} parent=35 // pred_check_branch
          %472 = sbr.rel (%p470) target = $region52
        $region51: #{tpu_custom_call.1} parent=35 // pred_region
          %v473 = vld [vmem:[#allocation2] sm:$0x1]
          %v474 = vrot.slane %v467, 4
          %v475 = vadd.f32 %v467, %v474
          %v476 = vrot.slane %v475, 2
          %v477 = vadd.f32 %v475, %v476
          %v478 = vrot.slane %v477, 1
          %v479 = vadd.f32 %v477, %v478
          %v480 = vadd.f32 %v473, %v479
          %vm481 = vcmask 0
          %482 = vst.msk [vmem:[#allocation2] sm:$0x1] %vm481, %v480
        $region52: #{tpu_custom_call.1} parent=35 // pred_fallthru
          _
        %p483 = scmp.ge.s32.totalorder %s468, 1
        // Predicated region
        $region53: #{tpu_custom_call.1} parent=35 // pred_check
          %p484 = pneg %p483
        $region54: #{tpu_custom_call.1} parent=35 // pred_check_branch
          %486 = sbr.rel (%p484) target = $region56
        $region55: #{tpu_custom_call.1} parent=35 // pred_region
          %s487 = smul.u32 %s468, 8
          %v488 = vlaneseq
          %v489 = vshrl.u32 %v488, 7
          %v490 = vstv %s487
          %v491 = vadd.s32 %v490, %v489
          %v492 = vld [vmem:[#allocation2] sm:$0x1]
          %vm493 = vcmp.lt.s32.totalorder %v491, 8
          %v494 = vsel %vm493, %v467, 0.0
          %v495 = vrot.slane %v494, 4
          %v496 = vadd.f32 %v494, %v495
          %v497 = vrot.slane %v496, 2
          %v498 = vadd.f32 %v496, %v497
          %v499 = vrot.slane %v498, 1
          %v500 = vadd.f32 %v498, %v499
          %v501 = vadd.f32 %v492, %v500
          %vm502 = vcmask 0
          %503 = vst.msk [vmem:[#allocation2] sm:$0x1] %vm502, %v501
        $region56: #{tpu_custom_call.1} parent=35 // pred_fallthru
          _
        // Predicated region
        $region57: #{tpu_custom_call.1} parent=35 // pred_check
          %p504 = pneg %p372
        $region58: #{tpu_custom_call.1} parent=35 // pred_check_branch
          %506 = sbr.rel (%p504) target = $region60
        $region59: #{tpu_custom_call.1} parent=35 // pred_region
          %v507 = vld [vmem:[#allocation2] sm:$0x1]
          %v508 = vmul.f32 %v507, 0.125
          %v510 = vlaneseq
          %v511 = vshrl.u32 %v510, 7
          %v512 = vsub.s32 0, %v511
          %v513 = vrot.slane %v508, %v512
          %514 = vset.pattern.permute.xlu0 0
          %515 = vperm.xlu0 %514, %v513
          %v516 = vpop.permute.xlu0 %515
          %518 = vst [vmem:[%s344] sm:$0xff] %v516
        $region60: #{tpu_custom_call.1} parent=35 // pred_fallthru
          _
        %s519 = sand.u32 %s179, 1
        %s520 = scalar_lea.sflag [#allocation7], %s519
        %s521 = sand.u32 %s179, 1
        %s522 = smul.addr %s521, 8
        %s523 = scalar_lea.vmem [#allocation10], %s522
        // Predicated region
        $region61: #{tpu_custom_call.1} parent=35 // pred_check
          %p524 = pneg %p189
        $region62: #{tpu_custom_call.1} parent=35 // pred_check_branch
          %526 = sbr.rel (%p524) target = $region64
        $region63: #{tpu_custom_call.1} parent=35 // pred_region
          %s528 = ssub.s32 128, 128
          %529 = vsyncadd %s520, %s528
          %s530 = smul.addr %s35, 128
          %s531 = scalar_lea.hbm %s5, %s530
          %s533 = sshll.u32 %s523, 4
          %s534 = int_to_ptr.vmem [resolvable:$true] %s533
          %536 = dma.vmem_to_hbm [thread:$0]  %s534, 128, %s531, %s520
        $region64: #{tpu_custom_call.1} parent=35 // pred_fallthru
          _
      $region36: #{tpu_custom_call.1} parent=5 // pred_fallthru
        _
      %p537 = scmp.le.s32.totalorder 2, %s26
      // Predicated region
      $region65: #{tpu_custom_call.1} parent=5 // pred_check
        %p538 = pneg %p537
      $region66: #{tpu_custom_call.1} parent=5 // pred_check_branch
        %540 = sbr.rel (%p538) target = $region68
      $region67: #{tpu_custom_call.1} parent=5 // pred_region
        %s541 = ssub.s32 %s26, 2
        // Predicated region
        $region69: #{tpu_custom_call.1} parent=67 // pred_check
          %p542 = pneg %p195
        $region70: #{tpu_custom_call.1} parent=67 // pred_check_branch
          %544 = sbr.rel (%p542) target = $region72
        $region71: #{tpu_custom_call.1} parent=67 // pred_region
          %s545 = sand.u32 %s180, 1
          %s546 = scalar_lea.sflag [#allocation7], %s545
          %s547 = sand.u32 %s180, 1
          %s548 = smul.addr %s547, 8
          %s549 = scalar_lea.vmem [#allocation10], %s548
          %550 = dma.done %s546, 128
        $region72: #{tpu_custom_call.1} parent=67 // pred_fallthru
          _
      $region68: #{tpu_custom_call.1} parent=5 // pred_fallthru
        _
    $region6: #{tpu_custom_call.1} parent=1 // loop_footer
      %s30 = sadd.s32 1, %s26
    $region7: #{tpu_custom_call.1} parent=1 // loop_footer_branch
      %25 = sbr.rel target = $region3
    $region8: #{tpu_custom_call.1} parent=1 // loop_exit
      _
    %551 = vsyncpa [#allocation6], 1
    %s552 = scalar_lea.sflag [#allocation6], 1
    %553 = vsyncpa %s552, 1
    %554 = vsyncpa [#allocation9], 1
    %s555 = scalar_lea.sflag [#allocation9], 1
    %556 = vsyncpa %s555, 1
    %557 = vsyncpa [#allocation7], 1
    %s558 = scalar_lea.sflag [#allocation7], 1
    %559 = vsyncpa %s558, 1

</llo_original>
